<compile_context>
chip_gen: v5e
topology: v5e:2x2
jax: 0.10.0
libtpu: 0.0.40
codegen_flags: <defaults>
</compile_context>

<pallas_src>
import jax
import jax.numpy as jnp
from jax.experimental import pallas as pl
from jax.experimental.pallas import tpu as pltpu

_LANE = 128


def _data_embedding_kernel(x_ref, w_ref, b_ref, o_ref):
    # x_ref : (1, L, C_in)   one batch element, full sequence (circular roll needs full L)
    # w_ref : (3*C_in, TD)   fused-tap weight tile (row k*C_in + c multiplies x[(t+k-1)%L, c])
    # b_ref : (1, TD)
    # o_ref : (1, L, TD)
    x = x_ref[0]                                   # (L, C_in)
    L = x.shape[0]
    x_prev = pltpu.roll(x, shift=1, axis=0)        # x_prev[t] = x[(t-1) % L]
    x_next = pltpu.roll(x, shift=L - 1, axis=0)    # x_next[t] = x[(t+1) % L]
    x_cat = jnp.concatenate([x_prev, x, x_next], axis=-1)       # (L, 3*C_in)
    y = jnp.dot(x_cat, w_ref[...], preferred_element_type=jnp.float32)
    y = y + b_ref[...].astype(jnp.float32)
    o_ref[0] = y.astype(o_ref.dtype)


def data_embedding(x, weight, bias=None, *, block_d=512, compute_dtype=None):
    """Circular Conv1d(k=3, pad=1) token embedding (== DataEmbedding.forward at inference).

    x:      (B, L, C_in)  channels-last input (the PyTorch forward permutes internally).
    weight: (3, C_in, D)  == PyTorch Conv1d weight (D, C_in, 3) transposed to (k, c, d).
    bias:   (1, D), (D,), or None.
    Returns (B, L, D) in x.dtype.
    """
    B, L, C_in = x.shape
    assert weight.shape[0] == 3 and weight.shape[1] == C_in
    D = weight.shape[2]

    # Fuse the 3 taps along the contraction dim: (3, C_in, D) -> (3*C_in, D).
    w_cat = weight.reshape(3 * C_in, D)
    if bias is None:
        bias = jnp.zeros((1, D), dtype=jnp.float32)
    bias = jnp.asarray(bias, dtype=jnp.float32).reshape(1, D)

    # Lane-dense output: pad D up to a multiple of 128 (sliced off at the end).
    n_lanes = pl.cdiv(D, _LANE)
    D_pad = n_lanes * _LANE
    if D_pad != D:
        w_cat = jnp.pad(w_cat, ((0, 0), (0, D_pad - D)))
        bias = jnp.pad(bias, ((0, 0), (0, D_pad - D)))

    # D tile: largest multiple of 128 that divides D_pad and is <= block_d.
    td_lanes = max(1, min(block_d // _LANE, n_lanes))
    while n_lanes % td_lanes:
        td_lanes -= 1
    TD = td_lanes * _LANE

    # Optional reduced-precision MXU operands (f32 accumulation kept) for v6e/v7x HBM-bound shapes.
    if compute_dtype is not None:
        x_in = x.astype(compute_dtype)
        w_cat = w_cat.astype(compute_dtype)
    else:
        x_in = x

    out = pl.pallas_call(
        _data_embedding_kernel,
        out_shape=jax.ShapeDtypeStruct((B, L, D_pad), x.dtype),
        grid_spec=pltpu.PrefetchScalarGridSpec(
            num_scalar_prefetch=0,
            # B is the innermost axis so the weight/bias tile (depends only on d) stays resident.
            grid=(D_pad // TD, B),
            in_specs=[
                pl.BlockSpec((1, L, C_in), lambda d, b: (b, 0, 0)),
                pl.BlockSpec((3 * C_in, TD), lambda d, b: (0, d)),
                pl.BlockSpec((1, TD), lambda d, b: (0, d)),
            ],
            out_specs=pl.BlockSpec((1, L, TD), lambda d, b: (b, 0, d)),
        ),
        compiler_params=pltpu.CompilerParams(
            dimension_semantics=("parallel", "parallel"),
        ),
    )(x_in, w_cat, bias)

    return out if D_pad == D else out[:, :, :D]


def _reference(x, weight, bias):
    # Pure-JAX reference of the circular conv1d (kernel=3, padding=1) + bias.
    hp = jax.lax.Precision.HIGHEST
    x_prev = jnp.roll(x, shift=1, axis=1)
    x_next = jnp.roll(x, shift=-1, axis=1)
    return (
        jnp.einsum("blc,cd->bld", x_prev, weight[0], precision=hp)
        + jnp.einsum("blc,cd->bld", x, weight[1], precision=hp)
        + jnp.einsum("blc,cd->bld", x_next, weight[2], precision=hp)
        + bias[None]
    )


def _make_params(key, c_in, d_model):
    # Conv1d weight (D, C_in, 3) with kaiming_normal(fan_in, leaky_relu) init, bias U(-1/sqrt(fan_in), ...).
    kw, kb = jax.random.split(key)
    fan_in = c_in * 3
    gain = (2.0 / (1.0 + 0.01 ** 2)) ** 0.5
    std = gain / (fan_in ** 0.5)
    w_torch_layout = jax.random.normal(kw, (d_model, c_in, 3), dtype=jnp.float32) * std
    bound = 1.0 / (fan_in ** 0.5)
    bias = jax.random.uniform(kb, (1, d_model), minval=-bound, maxval=bound, dtype=jnp.float32)
    # Kernel layout: (3, C_in, D); tap k multiplies x[(t + k - 1) % L].
    weight = jnp.transpose(w_torch_layout, (2, 1, 0))
    return weight, bias


if __name__ == "__main__":
    key = jax.random.PRNGKey(0)
    k1, k2, k3, k4 = jax.random.split(key, 4)

    # --- Test 1: shapes consistent with DataEmbedding.forward (batch=2, seq=8, c_in=4, d_model=32) ---
    B, L, C_in, D = 2, 8, 4, 32
    x = jax.random.normal(k1, (B, L, C_in), dtype=jnp.float32)
    x_mark = jax.random.normal(k2, (B, L, 4), dtype=jnp.float32)  # unused by the reference forward
    weight, bias = _make_params(k3, C_in, D)

    out = jax.block_until_ready(data_embedding(x, weight, bias))
    ref = _reference(x, weight, bias)
    assert out.shape == (B, L, D)
    assert jnp.allclose(out, ref, atol=1e-4, rtol=1e-4), "mismatch vs reference (test 1)"

    # --- Test 2: exercises D-tiling + lane padding (D=160 -> 256, TD=128) and C_in=7 ---
    B2, L2, C2, D2 = 2, 16, 7, 160
    x2 = jax.random.normal(k4, (B2, L2, C2), dtype=jnp.float32)
    w2, b2 = _make_params(jax.random.PRNGKey(1), C2, D2)

    out2 = jax.block_until_ready(data_embedding(x2, w2, b2, block_d=128))
    ref2 = _reference(x2, w2, b2)
    assert out2.shape == (B2, L2, D2)
    assert jnp.allclose(out2, ref2, atol=1e-4, rtol=1e-4), "mismatch vs reference (test 2)"

    print("KERNEL_OK")
</pallas_src>

<mosaic_0001>
module attributes {stable_mosaic.version = 11 : i64} {
  func.func @_data_embedding_kernel(%arg0: i32, %arg1: i32, %arg2: memref<1x8x4xf32, #tpu.memory_space<vmem>>, %arg3: memref<12x128xf32, #tpu.memory_space<vmem>>, %arg4: memref<1x128xf32, #tpu.memory_space<vmem>>, %arg5: memref<1x8x128xf32, #tpu.memory_space<vmem>>) attributes {dimension_semantics = [#tpu.dimension_semantics<parallel>, #tpu.dimension_semantics<parallel>], iteration_bounds = array<i64: 1, 2>, scalar_prefetch = 0 : i64, scratch_operands = 0 : i64, tpu.core_type = #tpu.core_type<tc>, window_params = [{transform_indices = @transform_0, window_bounds = array<i64: 1, 8, 4>}, {transform_indices = @transform_1, window_bounds = array<i64: 12, 128>}, {transform_indices = @transform_2, window_bounds = array<i64: 1, 128>}, {transform_indices = @transform_3, window_bounds = array<i64: 1, 8, 128>}]} {
    %c0 = arith.constant 0 : index
    %c0_0 = arith.constant 0 : index
    %c0_1 = arith.constant 0 : index
    %0 = vector.load %arg2[%c0, %c0_0, %c0_1] : memref<1x8x4xf32, #tpu.memory_space<vmem>>, vector<1x8x4xf32>
    %1 = vector.shape_cast %0 : vector<1x8x4xf32> to vector<8x4xf32>
    %c1_i32 = arith.constant 1 : i32
    %2 = tpu.dynamic_rotate %1 by %c1_i32 dim 0 : vector<8x4xf32>, i32 -> vector<8x4xf32>
    %c7_i32 = arith.constant 7 : i32
    %3 = tpu.dynamic_rotate %1 by %c7_i32 dim 0 : vector<8x4xf32>, i32 -> vector<8x4xf32>
    %4 = tpu.concatenate %2, %1, %3 in 1 : vector<8x4xf32>, vector<8x4xf32>, vector<8x4xf32> -> vector<8x12xf32>
    %c0_2 = arith.constant 0 : index
    %c0_3 = arith.constant 0 : index
    %5 = vector.load %arg3[%c0_2, %c0_3] : memref<12x128xf32, #tpu.memory_space<vmem>>, vector<12x128xf32>
    %cst = arith.constant dense<0.000000e+00> : vector<8x128xf32>
    %6 = tpu.matmul %4, %5, %cst {dimension_numbers = #tpu.dot_dimension_numbers<[1], [0], [0], [1], [0, 0, 1, 1], [], []>} : vector<8x12xf32>, vector<12x128xf32>, vector<8x128xf32> -> vector<8x128xf32>
    %c0_4 = arith.constant 0 : index
    %c0_5 = arith.constant 0 : index
    %7 = vector.load %arg4[%c0_4, %c0_5] : memref<1x128xf32, #tpu.memory_space<vmem>>, vector<1x128xf32>
    %8 = vector.broadcast %7 : vector<1x128xf32> to vector<8x128xf32>
    %9 = arith.addf %6, %8 : vector<8x128xf32>
    %c0_6 = arith.constant 0 : index
    %c0_7 = arith.constant 0 : index
    %c0_8 = arith.constant 0 : index
    %10 = vector.load %arg5[%c0_6, %c0_7, %c0_8] : memref<1x8x128xf32, #tpu.memory_space<vmem>>, vector<1x8x128xf32>
    %11 = vector.shape_cast %10 : vector<1x8x128xf32> to vector<8x128xf32>
    %12 = vector.shape_cast %9 : vector<8x128xf32> to vector<1x8x128xf32>
    tpu.vector_store %arg5[%c0_6, %c0_7, %c0_8], %12 {strides = array<i32>} : memref<1x8x128xf32, #tpu.memory_space<vmem>>, vector<1x8x128xf32>,
    return
  }
  func.func @transform_0(%arg0: i32, %arg1: i32) -> (i32, i32, i32) {
    %c0_i32 = arith.constant 0 : i32
    %c0_i32_0 = arith.constant 0 : i32
    %c0_i32_1 = arith.constant 0 : i32
    return %arg1, %c0_i32, %c0_i32_0 : i32, i32, i32
  }
  func.func @transform_1(%arg0: i32, %arg1: i32) -> (i32, i32) {
    %c0_i32 = arith.constant 0 : i32
    %c0_i32_0 = arith.constant 0 : i32
    return %c0_i32, %arg0 : i32, i32
  }
  func.func @transform_2(%arg0: i32, %arg1: i32) -> (i32, i32) {
    %c0_i32 = arith.constant 0 : i32
    %c0_i32_0 = arith.constant 0 : i32
    return %c0_i32, %arg0 : i32, i32
  }
  func.func @transform_3(%arg0: i32, %arg1: i32) -> (i32, i32, i32) {
    %c0_i32 = arith.constant 0 : i32
    %c0_i32_0 = arith.constant 0 : i32
    return %arg1, %c0_i32, %arg0 : i32, i32, i32
  }
}

</mosaic_0001>

<llo_original>
// kernel: tpu_custom_call.1
$region0: #{tpu_custom_call.1}
  #allocation0 [shape = 'u32[]', space=smem, size = 0x4, offset = 0x4, fixed_abs, tag = 'smem constant byte address 0x4 - core index']
  #allocation1 [shape = 'u32[72,128]{1,0:T(1,128)}', space=vmem, size = 0x9000, scoped, tag = 'internal scratch']
  %s0 = inlined_call_operand.vmem [shape: f32[2,8,4], index: 0, kind: input, shape index: {}]
  %s1 = inlined_call_operand.vmem [shape: f32[12,128], index: 1, kind: input, shape index: {}]
  %s2 = inlined_call_operand.vmem [shape: f32[1,128], index: 2, kind: input, shape index: {}]
  %s3 = inlined_call_operand.hbm [shape: f32[2,8,128], index: 3, kind: output, shape index: {}]
  %s4 = sld [smem:[#allocation0]]
  $region45: #{tpu_custom_call.1} parent=0
    _
  %s6 = ssub.s32 1, %s4
  %s7 = scalar_select 0, %s6, %s4
  $region1: #{tpu_custom_call.1} parent=0
    #allocation2 [shape = 'u8[8192]{0}', space=vmem, size = 0x2000, scoped, tag = 'output window, operand 0']
    #allocation3 [shape = 's32[2]{0}', space=sflag, size = 0x8, scoped, tag = 'scoped memory for tpu_custom_call.1']
    %8 = vsyncpa [#allocation3], 0
    %s9 = scalar_lea.sflag [#allocation3], 1
    %10 = vsyncpa %s9, 0
    loop: start=0, step=1, limit=4
    $region2: #{tpu_custom_call.1} parent=1 // loop_pre_header
      _
    $region3: #{tpu_custom_call.1} parent=1 // loop_header
      %s12 = sphi 0, %s16
      %p13 = scmp.ge.s32.totalorder %s12, 4
      %s19 = sphi 0, %s31
      %s20 = sphi 0, %s27
      %s21 = sphi 0, %s19
      %s22 = sphi 0, %s20
      %s23 = sphi 0, %s21
      %s24 = sphi 0, %s22
      %s34 = sphi 0, %s36
      %s37 = sphi 0, %s34
      %s38 = sphi 0, %s37
      %s54 = sphi 0, %s38
      %s60 = sphi 0, %s62
      %s63 = sphi 0, %s60
      %s64 = sphi 0, %s63
      %s80 = sphi 0, %s64
      %s86 = sphi 0, %s88
      %s89 = sphi 0, %s86
      %s90 = sphi 0, %s89
      %s106 = sphi 0, %s90
      %s114 = sphi 0, %s116
      %s117 = sphi 0, %s114
      %s118 = sphi 0, %s117
      %s134 = sphi 0, %s118
    $region4: #{tpu_custom_call.1} parent=1 // loop_header_branch
      %15 = sbr.rel (%p13) target = $region8
    $region5: #{tpu_custom_call.1} parent=1 // loop_body
      %s17 = ssub.s32 %s12, 1
      %s18 = ssub.s32 %s12, 2
      %s25 = sadd.s32 1, %s20
      %p26 = scmp.ge.s32.totalorder %s25, 2
      %s27 = scalar_select %p26, 0, %s25
      %s28 = sadd.s32 1, %s19
      %s29 = scalar_select %p26, %s28, %s19
      %p30 = scmp.ge.s32.totalorder %s29, 1
      %s31 = scalar_select %p30, 0, %s29
      %s32 = ssub.s32 %s20, %s27
      %p33 = scmp.eq.s32.totalorder %s32, 0
      %s35 = sadd.s32 %s34, 1
      %s36 = scalar_select %p33, %s34, %s35
      %p39 = pneg %p33
      %p40 = scmp.eq.s32.totalorder %s12, 1
      %p41 = por %p39, %p40
      %p42 = scmp.ne.s32.totalorder %s34, %s37
      %p43 = scmp.eq.s32.totalorder %s12, 0
      %p44 = por %p42, %p43
      %p45 = scmp.ne.s32.totalorder %s34, %s37
      %p46 = scmp.eq.s32.totalorder %s17, 1
      %p47 = por %p45, %p46
      %p48 = scmp.ne.s32.totalorder %s37, %s38
      %p49 = scmp.eq.s32.totalorder %s17, 0
      %p50 = por %p48, %p49
      %p51 = scmp.ne.s32.totalorder %s37, %s38
      %p52 = scmp.eq.s32.totalorder %s18, 1
      %p53 = por %p51, %p52
      %p55 = scmp.ne.s32.totalorder %s38, %s54
      %p56 = scmp.eq.s32.totalorder %s18, 0
      %p57 = por %p55, %p56
      %s58 = ssub.s32 %s19, %s31
      %p59 = scmp.eq.s32.totalorder %s58, 0
      %s61 = sadd.s32 %s60, 1
      %s62 = scalar_select %p59, %s60, %s61
      %p65 = pneg %p59
      %p66 = scmp.eq.s32.totalorder %s12, 1
      %p67 = por %p65, %p66
      %p68 = scmp.ne.s32.totalorder %s60, %s63
      %p69 = scmp.eq.s32.totalorder %s12, 0
      %p70 = por %p68, %p69
      %p71 = scmp.ne.s32.totalorder %s60, %s63
      %p72 = scmp.eq.s32.totalorder %s17, 1
      %p73 = por %p71, %p72
      %p74 = scmp.ne.s32.totalorder %s63, %s64
      %p75 = scmp.eq.s32.totalorder %s17, 0
      %p76 = por %p74, %p75
      %p77 = scmp.ne.s32.totalorder %s63, %s64
      %p78 = scmp.eq.s32.totalorder %s18, 1
      %p79 = por %p77, %p78
      %p81 = scmp.ne.s32.totalorder %s64, %s80
      %p82 = scmp.eq.s32.totalorder %s18, 0
      %p83 = por %p81, %p82
      %s84 = ssub.s32 %s19, %s31
      %p85 = scmp.eq.s32.totalorder %s84, 0
      %s87 = sadd.s32 %s86, 1
      %s88 = scalar_select %p85, %s86, %s87
      %p91 = pneg %p85
      %p92 = scmp.eq.s32.totalorder %s12, 1
      %p93 = por %p91, %p92
      %p94 = scmp.ne.s32.totalorder %s86, %s89
      %p95 = scmp.eq.s32.totalorder %s12, 0
      %p96 = por %p94, %p95
      %p97 = scmp.ne.s32.totalorder %s86, %s89
      %p98 = scmp.eq.s32.totalorder %s17, 1
      %p99 = por %p97, %p98
      %p100 = scmp.ne.s32.totalorder %s89, %s90
      %p101 = scmp.eq.s32.totalorder %s17, 0
      %p102 = por %p100, %p101
      %p103 = scmp.ne.s32.totalorder %s89, %s90
      %p104 = scmp.eq.s32.totalorder %s18, 1
      %p105 = por %p103, %p104
      %p107 = scmp.ne.s32.totalorder %s90, %s106
      %p108 = scmp.eq.s32.totalorder %s18, 0
      %p109 = por %p107, %p108
      %s110 = ssub.s32 %s20, %s27
      %s111 = ssub.s32 %s19, %s31
      %s112 = sor.u32 %s110, %s111
      %p113 = scmp.eq.s32.totalorder %s112, 0
      %s115 = sadd.s32 %s114, 1
      %s116 = scalar_select %p113, %s114, %s115
      %p119 = pneg %p113
      %p120 = scmp.eq.s32.totalorder %s12, 1
      %p121 = por %p119, %p120
      %p122 = scmp.ne.s32.totalorder %s114, %s117
      %p123 = scmp.eq.s32.totalorder %s12, 0
      %p124 = por %p122, %p123
      %p125 = scmp.ne.s32.totalorder %s114, %s117
      %p126 = scmp.eq.s32.totalorder %s17, 1
      %p127 = por %p125, %p126
      %p128 = scmp.ne.s32.totalorder %s117, %s118
      %p129 = scmp.eq.s32.totalorder %s17, 0
      %p130 = por %p128, %p129
      %p131 = scmp.ne.s32.totalorder %s117, %s118
      %p132 = scmp.eq.s32.totalorder %s18, 1
      %p133 = por %p131, %p132
      %p135 = scmp.ne.s32.totalorder %s118, %s134
      %p136 = scmp.eq.s32.totalorder %s18, 0
      %p137 = por %p135, %p136
      %p138 = scmp.le.s32.totalorder 1, %s12
      %p139 = scmp.lt.s32.totalorder %s12, 3
      %p140 = pnand %p138, %p139
      %p141 = pneg %p140
      // Predicated region
      $region9: #{tpu_custom_call.1} parent=5 // pred_check
        _
      $region10: #{tpu_custom_call.1} parent=5 // pred_check_branch
        %143 = sbr.rel (%p140) target = $region12
      $region11: #{tpu_custom_call.1} parent=5 // pred_region
        %s144 = ssub.s32 %s12, 1
        // Predicated region
        $region13: #{tpu_custom_call.1} parent=11 // pred_check
          %p145 = pneg %p76
        $region14: #{tpu_custom_call.1} parent=11 // pred_check_branch
          %147 = sbr.rel (%p145) target = $region16
        $region15: #{tpu_custom_call.1} parent=11 // pred_region
          %p148 = scmp.lt.s32.totalorder %s21, 0
          %s149 = scalar_select %p148, %s21, 0
          %s150 = smul.addr %s149, 8
          %s151 = scalar_lea.vmem %s1, %s150
        $region16: #{tpu_custom_call.1} parent=11 // pred_fallthru
          _
        // Predicated region
        $region17: #{tpu_custom_call.1} parent=11 // pred_check
          %p152 = pneg %p102
        $region18: #{tpu_custom_call.1} parent=11 // pred_check_branch
          %154 = sbr.rel (%p152) target = $region20
        $region19: #{tpu_custom_call.1} parent=11 // pred_region
          %p155 = scmp.lt.s32.totalorder %s21, 0
          %s156 = scalar_select %p155, %s21, 0
          %s157 = scalar_lea.vmem %s2, %s156
        $region20: #{tpu_custom_call.1} parent=11 // pred_fallthru
          _
      $region12: #{tpu_custom_call.1} parent=5 // pred_fallthru
        _
      %p158 = scmp.lt.s32.totalorder %s12, 2
      // Predicated region
      $region21: #{tpu_custom_call.1} parent=5 // pred_check
        %p159 = pneg %p158
      $region22: #{tpu_custom_call.1} parent=5 // pred_check_branch
        %161 = sbr.rel (%p159) target = $region24
      $region23: #{tpu_custom_call.1} parent=5 // pred_region
        // Predicated region
        $region25: #{tpu_custom_call.1} parent=23 // pred_check
          %p162 = pneg %p44
        $region26: #{tpu_custom_call.1} parent=23 // pred_check_branch
          %164 = sbr.rel (%p162) target = $region28
        $region27: #{tpu_custom_call.1} parent=23 // pred_region
          %p165 = scmp.lt.s32.totalorder %s20, 1
          %s166 = scalar_select %p165, %s20, 1
          %s167 = smul.addr %s166, 8
          %s168 = scalar_lea.vmem %s0, %s167
        $region28: #{tpu_custom_call.1} parent=23 // pred_fallthru
          _
      $region24: #{tpu_custom_call.1} parent=5 // pred_fallthru
        _
      %p169 = scmp.le.s32.totalorder 1, %s12
      %p170 = scmp.lt.s32.totalorder %s12, 3
      %p171 = pnand %p169, %p170
      %p172 = pneg %p171
      // Predicated region
      $region29: #{tpu_custom_call.1} parent=5 // pred_check
        _
      $region30: #{tpu_custom_call.1} parent=5 // pred_check_branch
        %174 = sbr.rel (%p171) target = $region32
      $region31: #{tpu_custom_call.1} parent=5 // pred_region
        %s175 = ssub.s32 %s12, 1
        %p176 = scmp.lt.s32.totalorder %s22, 1
        %s177 = scalar_select %p176, %s22, 1
        %s178 = smul.addr %s177, 8
        %s179 = scalar_lea.vmem %s0, %s178
        %p180 = pneg %p50
        %p181 = pneg %p47
        %p182 = scmp.lt.s32.totalorder %s21, 0
        %s183 = scalar_select %p182, %s21, 0
        %s184 = smul.addr %s183, 8
        %s185 = scalar_lea.vmem %s1, %s184
        %p186 = pneg %p76
        %p187 = pneg %p73
        %p188 = scmp.lt.s32.totalorder %s21, 0
        %s189 = scalar_select %p188, %s21, 0
        %s190 = scalar_lea.vmem %s2, %s189
        %p191 = pneg %p102
        %p192 = pneg %p99
        %p193 = pneg %p130
        %p194 = pneg %p127
        %s195 = sand.u32 %s117, 1
        %s196 = scalar_lea.sflag [#allocation3], %s195
        %s197 = sand.u32 %s117, 1
        %s198 = smul.addr %s197, 8
        %s199 = scalar_lea.vmem [#allocation2], %s198
        %p200 = scmp.lt.s32.totalorder %s22, 1
        %s201 = scalar_select %p200, %s22, 1
        %s202 = smul.addr %s201, 8
        %s203 = scalar_lea.vmem %s0, %s202
        %p204 = scmp.lt.s32.totalorder %s21, 0
        %s205 = scalar_select %p204, %s21, 0
        %s206 = smul.addr %s205, 8
        %s207 = scalar_lea.vmem %s1, %s206
        %p208 = scmp.lt.s32.totalorder %s21, 0
        %s209 = scalar_select %p208, %s21, 0
        %s210 = scalar_lea.vmem %s2, %s209
        %v211 = vld [vmem:[%s203] sm:$0xff]
        %v212 = vrot.slane %v211, 7
        %v213 = vrot.slane %v211, 1
        %215 = vrot.lane.b32.xlu0 %v211, 4
        %v216 = vpop.permute.xlu0 %215
        %219 = vrot.lane.b32.xlu0 %v213, 8
        %v220 = vpop.permute.xlu0 %219
        %vm222 = vcmask 31744
        %v223 = vsel %vm222, %v212, %v216
        %vm224 = vcmask 64512
        %v225 = vsel %vm224, %v223, %v220
        %v226 = vld [vmem:[%s207] sm:$0xff]
        %v227 = vld [vmem:[%s207 + $0x8] sm:$0xf]
        %v228 = vld [vmem:[%s210] sm:$0x1]
        %v230 = vperm.slane %v228, 0
        %vm232 = vcmask 97280
        %v234 = vsel %vm232, %v225, 0
        %vm236 = vcmask 1043456
        %v238 = vsel %vm236, %v227, 0
        %240 = vmatpush.msra.mxu0 0.0
        %241 = vmatpush.msra.mxu0 0.0
        %242 = vmatpush.msra.mxu0 0.0
        %243 = vmatpush.msra.mxu0 0.0
        %244 = vmatpush.msra.mxu0 0.0
        %245 = vmatpush.msra.mxu0 0.0
        %246 = vmatpush.msra.mxu0 0.0
        %247 = vmatpush.msra.mxu0 0.0
        %248 = vmatpush.msra.mxu0 0.0
        %249 = vmatpush.msra.mxu0 0.0
        %250 = vmatpush.msra.mxu0 0.0
        %251 = vmatpush.msra.mxu0 0.0
        %252 = vmatpush.msra.mxu0 0.0
        %253 = vmatpush.msra.mxu0 0.0
        %254 = vmatpush.msra.mxu0 %v238
        %255 = vmatpush.msra.mxu0 %v226
        %256 = vmatmul.f32.gmra.mxu0 %v234
        %v257 = vpop.f32.mrf.mxu0
        %v258 = vadd.f32 %v230, %v257
        %259 = vdwg.mxu0
        %260 = vst [vmem:[%s199] sm:$0xff] %v258
        %s261 = sand.u32 %s117, 1
        %s262 = scalar_lea.sflag [#allocation3], %s261
        %s263 = sand.u32 %s117, 1
        %s264 = smul.addr %s263, 8
        %s265 = scalar_lea.vmem [#allocation2], %s264
        // Predicated region
        $region33: #{tpu_custom_call.1} parent=31 // pred_check
          %p266 = pneg %p127
        $region34: #{tpu_custom_call.1} parent=31 // pred_check_branch
          %268 = sbr.rel (%p266) target = $region36
        $region35: #{tpu_custom_call.1} parent=31 // pred_region
          %270 = vsyncadd %s262, 0
          %s271 = sadd.s32 %s21, %s22
          %s272 = smul.addr %s271, 8
          %s273 = scalar_lea.hbm %s3, %s272
          %s275 = sshll.u32 %s265, 4
          %s276 = int_to_ptr.vmem [resolvable:$true] %s275
          %s277 = sshll.u32 %s273, 4
          %s278 = int_to_ptr.hbm [resolvable:$true] %s277
          %280 = dma.vmem_to_hbm [thread:$0]  %s276, 128, %s278, %s262
        $region36: #{tpu_custom_call.1} parent=31 // pred_fallthru
          _
      $region32: #{tpu_custom_call.1} parent=5 // pred_fallthru
        _
      %p281 = scmp.le.s32.totalorder 2, %s12
      // Predicated region
      $region37: #{tpu_custom_call.1} parent=5 // pred_check
        %p282 = pneg %p281
      $region38: #{tpu_custom_call.1} parent=5 // pred_check_branch
        %284 = sbr.rel (%p282) target = $region40
      $region39: #{tpu_custom_call.1} parent=5 // pred_region
        %s285 = ssub.s32 %s12, 2
        // Predicated region
        $region41: #{tpu_custom_call.1} parent=39 // pred_check
          %p286 = pneg %p133
        $region42: #{tpu_custom_call.1} parent=39 // pred_check_branch
          %288 = sbr.rel (%p286) target = $region44
        $region43: #{tpu_custom_call.1} parent=39 // pred_region
          %s289 = sand.u32 %s118, 1
          %s290 = scalar_lea.sflag [#allocation3], %s289
          %s291 = sand.u32 %s118, 1
          %s292 = smul.addr %s291, 8
          %s293 = scalar_lea.vmem [#allocation2], %s292
          %295 = dma.done %s290, 128
        $region44: #{tpu_custom_call.1} parent=39 // pred_fallthru
          _
      $region40: #{tpu_custom_call.1} parent=5 // pred_fallthru
        _
    $region6: #{tpu_custom_call.1} parent=1 // loop_footer
      %s16 = sadd.s32 1, %s12
    $region7: #{tpu_custom_call.1} parent=1 // loop_footer_branch
      %11 = sbr.rel target = $region3
    $region8: #{tpu_custom_call.1} parent=1 // loop_exit
      _
    %296 = vsyncpa [#allocation3], 1
    %s297 = scalar_lea.sflag [#allocation3], 1
    %298 = vsyncpa %s297, 1

</llo_original>
